<compile_context>
chip_gen: v5e
topology: v5e:2x2
jax: 0.10.0
libtpu: 0.0.40
codegen_flags: <defaults>
</compile_context>

<pallas_src>
import math
import jax
import jax.numpy as jnp
from jax.experimental import pallas as pl
from jax.experimental.pallas import tpu as pltpu


_SQRT_HALF = 0.7071067811865476
# On v5e (no bf16 VPU, 1 vst slot) the tanh-approx GELU moves work onto the EUP slot;
# kept False to match PyTorch nn.GELU()'s exact-erf default bit-for-bit semantics.
_APPROX_GELU = False


def _gelu(x):
    if _APPROX_GELU:
        return jax.nn.gelu(x, approximate=True)
    return 0.5 * x * (1.0 + jax.lax.erf(x * _SQRT_HALF))


def _round_up(x, m):
    return (x + m - 1) // m * m


def _pad2d(a, rows, cols):
    return jnp.pad(a, ((0, rows - a.shape[0]), (0, cols - a.shape[1])))


# ---------------------------------------------------------------------------
# Kernels
# ---------------------------------------------------------------------------

def _fused_act(x, w12, b12, th):
    """One MXU pass for fc1|gate, then gelu(h) * sigmoid(g) in f32 (VPU/EUP)."""
    hg = jnp.dot(x, w12, preferred_element_type=jnp.float32) + b12
    h = hg[:, :th]
    g = hg[:, th:]
    return _gelu(h) * jax.nn.sigmoid(g)


def _mlp_kernel_resident(x_ref, w12_ref, b12_ref, w2_ref, b2_ref, o_ref):
    """Full-weight-residency path. grid = (row tiles,); weights fetched once."""
    th = w12_ref.shape[1] // 2
    a = _fused_act(x_ref[...], w12_ref[...], b12_ref[...], th)
    out = jnp.dot(a.astype(w2_ref.dtype), w2_ref[...],
                  preferred_element_type=jnp.float32) + b2_ref[...]
    o_ref[...] = out.astype(o_ref.dtype)


def _mlp_kernel_chunked(x_ref, w12_ref, b12_ref, w2_ref, b2_ref, o_ref, acc_ref):
    """H-chunked path. grid = (row tiles, H chunks); f32 accumulator in VMEM."""
    j = pl.program_id(1)

    @pl.when(j == 0)
    def _init():
        acc_ref[...] = jnp.zeros_like(acc_ref)

    th = w12_ref.shape[1] // 2
    a = _fused_act(x_ref[...], w12_ref[...], b12_ref[...], th)
    # v7x: keep the `+= dot` form so Mosaic can use the MRB in-place accumulate.
    acc_ref[...] += jnp.dot(a.astype(w2_ref.dtype), w2_ref[...],
                            preferred_element_type=jnp.float32)

    @pl.when(j == pl.num_programs(1) - 1)
    def _finalize():
        o_ref[...] = (acc_ref[...] + b2_ref[...]).astype(o_ref.dtype)


# ---------------------------------------------------------------------------
# Planning (once per shape/dtype) and packing (once per parameter set)
# ---------------------------------------------------------------------------

def _vmem_capacity_bytes():
    try:
        info = pltpu.get_tpu_info()
        cap = getattr(info, "vmem_capacity_bytes", None)
        if cap:
            return int(cap)
    except Exception:
        pass
    return 64 * 2**20  # conservative fallback (v7x per-TC VMEM)


def plan_tiles(M, D, H, *, compute_dtype=jnp.bfloat16, out_dtype=jnp.float32,
               tm=None, th=None):
    """Choose row/hidden tiles and the VMEM limit. Call once and reuse."""
    cbytes = jnp.dtype(compute_dtype).itemsize
    obytes = jnp.dtype(out_dtype).itemsize
    Dp = _round_up(D, 128)

    vmem_cap = _vmem_capacity_bytes()
    vmem_limit = int(vmem_cap * 0.78)          # headroom for compiler scratch/sems
    tile_budget = max(vmem_limit - (4 << 20), 16 << 20)

    # Row tile: AI per weight byte == tm, so go big; but keep >= 2 row tiles
    # whenever possible so the "parallel" axis can shard across v7x's 2 TCs.
    M8 = _round_up(M, 8)
    user_tm = tm is not None
    tm = 512 if tm is None else tm
    tm = max(8, min(tm, M8) // 8 * 8)
    if not user_tm and M8 >= 16 and -(-M8 // tm) < 2:
        tm = _round_up(-(-M8 // 2), 8)

    def fixed_bytes(tm_):
        # x tile + out tile (both double-buffered by the pipeline).
        return 2 * tm_ * Dp * cbytes + 2 * tm_ * Dp * obytes

    # ---- full-weight-residency path: weights DMAed exactly once ---------------
    if th is None:
        Hp_res = _round_up(H, 128)
        w_res = (2 * (Dp * 2 * Hp_res + Hp_res * Dp) * cbytes   # W1|Wg + W2 (x2 bufs)
                 + 2 * (2 * Hp_res + Dp) * 4)                   # biases (f32)
        if fixed_bytes(tm) + w_res <= tile_budget:
            return dict(resident=True, Mp=_round_up(M, tm), Dp=Dp, Hp=Hp_res,
                        tm=tm, th=Hp_res, n_h=1, vmem_limit=vmem_limit)

    # ---- H-chunked path: th a multiple of 256 (v6e/v7x MXU is 256 wide) -------
    if th is not None:
        th = max(128, th // 128 * 128)
        Hp = _round_up(H, th)
    else:
        Hp = _round_up(H, 256)

        def chunk_bytes(t):
            return 2 * (Dp * 2 * t + t * Dp) * cbytes + 2 * (2 * t + Dp) * 4

        while True:
            budget = tile_budget - fixed_bytes(tm) - tm * Dp * 4   # minus f32 acc
            th = next((k * 256 for k in range(Hp // 256, 0, -1)
                       if Hp % (k * 256) == 0 and chunk_bytes(k * 256) <= budget),
                      None)
            if th is not None or tm <= 64 or user_tm:
                th = th or 256
                break
            tm = max(64, (tm // 2) // 8 * 8)   # halve tm before th drops below 256

    return dict(resident=False, Mp=_round_up(M, tm), Dp=Dp, Hp=Hp,
                tm=tm, th=th, n_h=Hp // th, vmem_limit=vmem_limit)


def pack_params(params, plan, *, compute_dtype=jnp.bfloat16):
    """Pad + interleave weights ONCE (hoisted out of the per-call path)."""
    Dp, Hp, th, n_h = plan["Dp"], plan["Hp"], plan["th"], plan["n_h"]
    f32 = jnp.float32
    w1 = _pad2d(params["w1"].astype(f32), Dp, Hp)
    wg = _pad2d(params["wg"].astype(f32), Dp, Hp)
    b1 = _pad2d(params["b1"].astype(f32), 1, Hp)
    bg = _pad2d(params["bg"].astype(f32), 1, Hp)
    w2 = _pad2d(params["w2"].astype(f32), Hp, Dp).astype(compute_dtype)
    b2 = _pad2d(params["b2"].astype(f32), 1, Dp)

    # Interleave fc1|gate per hidden chunk: block j of (Dp, 2*th) = [W1_j | Wg_j].
    w12 = jnp.concatenate(
        [w1.reshape(Dp, n_h, th), wg.reshape(Dp, n_h, th)], axis=2
    ).reshape(Dp, 2 * Hp).astype(compute_dtype)
    b12 = jnp.concatenate(
        [b1.reshape(1, n_h, th), bg.reshape(1, n_h, th)], axis=2
    ).reshape(1, 2 * Hp)  # biases stay f32
    return {"w12": w12, "b12": b12, "w2": w2, "b2": b2}


# ---------------------------------------------------------------------------
# Forward
# ---------------------------------------------------------------------------

def adaptive_mlp_packed(x, packed, plan, *, compute_dtype=jnp.bfloat16):
    """x: (B, N, D); packed: output of pack_params; plan: output of plan_tiles."""
    B, N, D = x.shape
    M = B * N
    Mp, Dp, Hp = plan["Mp"], plan["Dp"], plan["Hp"]
    tm, th, n_h = plan["tm"], plan["th"], plan["n_h"]
    cbytes = jnp.dtype(compute_dtype).itemsize
    obytes = jnp.dtype(x.dtype).itemsize

    # Single cast: reshape -> pad -> compute dtype (no f32 round trip).
    x2d = _pad2d(x.reshape(M, D), Mp, Dp).astype(compute_dtype)

    n_row_tiles = Mp // tm
    w_bytes = packed["w12"].size * cbytes + packed["w2"].size * cbytes
    b_bytes = packed["b12"].size * 4 + packed["b2"].size * 4
    w_passes = 1 if plan["resident"] else n_row_tiles   # weight re-streaming
    cost = pl.CostEstimate(
        flops=6 * Mp * Dp * Hp,                          # 2*M*D*2H (fc1|gate) + 2*M*H*D
        transcendentals=2 * Mp * Hp,                     # erf + sigmoid per hidden unit
        bytes_accessed=(x2d.size * cbytes + (w_bytes + b_bytes) * w_passes
                        + Mp * Dp * obytes),
    )

    operands = (x2d, packed["w12"], packed["b12"], packed["w2"], packed["b2"])

    if plan["resident"]:
        out2d = pl.pallas_call(
            _mlp_kernel_resident,
            out_shape=jax.ShapeDtypeStruct((Mp, Dp), x.dtype),
            grid_spec=pltpu.PrefetchScalarGridSpec(
                num_scalar_prefetch=0,
                grid=(n_row_tiles,),
                in_specs=[
                    pl.BlockSpec((tm, Dp), lambda i: (i, 0)),       # x row tile
                    pl.BlockSpec((Dp, 2 * Hp), lambda i: (0, 0)),   # W1|Wg (once)
                    pl.BlockSpec((1, 2 * Hp), lambda i: (0, 0)),    # b1|bg (once)
                    pl.BlockSpec((Hp, Dp), lambda i: (0, 0)),       # W2 (once)
                    pl.BlockSpec((1, Dp), lambda i: (0, 0)),        # b2 (once)
                ],
                out_specs=pl.BlockSpec((tm, Dp), lambda i: (i, 0)),
            ),
            compiler_params=pltpu.CompilerParams(
                dimension_semantics=("parallel",),
                vmem_limit_bytes=plan["vmem_limit"],
            ),
            cost_estimate=cost,
        )(*operands)
    else:
        out2d = pl.pallas_call(
            _mlp_kernel_chunked,
            out_shape=jax.ShapeDtypeStruct((Mp, Dp), x.dtype),
            grid_spec=pltpu.PrefetchScalarGridSpec(
                num_scalar_prefetch=0,
                grid=(n_row_tiles, n_h),
                in_specs=[
                    pl.BlockSpec((tm, Dp), lambda i, j: (i, 0)),      # x row tile
                    pl.BlockSpec((Dp, 2 * th), lambda i, j: (0, j)),  # W1|Wg chunk
                    pl.BlockSpec((1, 2 * th), lambda i, j: (0, j)),   # b1|bg chunk
                    pl.BlockSpec((th, Dp), lambda i, j: (j, 0)),      # W2 chunk
                    pl.BlockSpec((1, Dp), lambda i, j: (0, 0)),       # b2
                ],
                out_specs=pl.BlockSpec((tm, Dp), lambda i, j: (i, 0)),
                scratch_shapes=[pltpu.VMEM((tm, Dp), jnp.float32)],   # f32 accumulator
            ),
            compiler_params=pltpu.CompilerParams(
                dimension_semantics=("parallel", "arbitrary"),
                vmem_limit_bytes=plan["vmem_limit"],
            ),
            cost_estimate=cost,
        )(*operands)

    return out2d[:M, :D].reshape(B, N, D)


def adaptive_mlp(x, params, *, compute_dtype=jnp.bfloat16, tm=None, th=None):
    """One-shot convenience wrapper. For repeated calls, hoist plan_tiles + pack_params."""
    B, N, D = x.shape
    H = params["w1"].shape[1]
    plan = plan_tiles(B * N, D, H, compute_dtype=compute_dtype,
                      out_dtype=x.dtype, tm=tm, th=th)
    packed = pack_params(params, plan, compute_dtype=compute_dtype)
    return adaptive_mlp_packed(x, packed, plan, compute_dtype=compute_dtype)


# ---------------------------------------------------------------------------
# Reference + init
# ---------------------------------------------------------------------------

def init_params(key, dim, hidden_dim=None, dtype=jnp.float32):
    """Deterministic init mimicking nn.Linear's uniform(-1/sqrt(fan_in), 1/sqrt(fan_in))."""
    hidden_dim = hidden_dim or dim * 4
    ks = jax.random.split(key, 6)

    def lin(kw, kb, fan_in, fan_out):
        bound = 1.0 / math.sqrt(fan_in)
        w = jax.random.uniform(kw, (fan_in, fan_out), dtype, -bound, bound)
        b = jax.random.uniform(kb, (1, fan_out), dtype, -bound, bound)
        return w, b

    w1, b1 = lin(ks[0], ks[1], dim, hidden_dim)       # fc1
    w2, b2 = lin(ks[2], ks[3], hidden_dim, dim)       # fc2
    wg, bg = lin(ks[4], ks[5], dim, hidden_dim)       # gate
    return {"w1": w1, "b1": b1, "w2": w2, "b2": b2, "wg": wg, "bg": bg}


def adaptive_mlp_reference(x, params):
    """Pure-JAX reference of the PyTorch forward (drop=0.0)."""
    B, N, D = x.shape
    x2d = x.reshape(-1, D)
    h = x2d @ params["w1"] + params["b1"]
    g = jax.nn.sigmoid(x2d @ params["wg"] + params["bg"])
    h = 0.5 * h * (1.0 + jax.lax.erf(h * _SQRT_HALF)) * g
    out = h @ params["w2"] + params["b2"]
    return out.reshape(B, N, D)


if __name__ == "__main__":
    key = jax.random.PRNGKey(0)
    k_x, k_p, k_x2, k_p2 = jax.random.split(key, 4)

    # --- fidelity check: f32 operands, small module-like shapes (resident path) ---
    B, N, D = 2, 8, 32                          # hidden = 4*D = 128
    x = jax.random.normal(k_x, (B, N, D), jnp.float32)
    params = init_params(k_p, D)
    out = jax.block_until_ready(adaptive_mlp(x, params, compute_dtype=jnp.float32))
    ref = adaptive_mlp_reference(x, params)
    assert out.shape == (B, N, D)
    assert jnp.allclose(out, ref, atol=1e-4, rtol=1e-4), "f32 mismatch vs reference"

    # --- perf path #1: bf16 operands, resident weights, >=2 row tiles (megacore) --
    B2, N2, D2 = 2, 128, 128                    # M = 256, hidden = 512
    x2 = jax.random.normal(k_x2, (B2, N2, D2), jnp.float32)
    params2 = init_params(k_p2, D2)
    out2 = jax.block_until_ready(adaptive_mlp(x2, params2, compute_dtype=jnp.bfloat16))
    ref2 = adaptive_mlp_reference(x2, params2)
    assert out2.shape == (B2, N2, D2)
    err2 = float(jnp.max(jnp.abs(out2 - ref2)))
    assert err2 < 5e-2, f"bf16 (resident) mismatch vs reference (max abs err {err2})"

    # --- perf path #2: H-chunked accumulator path, weights pre-packed once --------
    plan3 = plan_tiles(B2 * N2, D2, params2["w1"].shape[1],
                       compute_dtype=jnp.bfloat16, out_dtype=x2.dtype, th=256)
    packed3 = pack_params(params2, plan3, compute_dtype=jnp.bfloat16)
    out3 = jax.block_until_ready(
        adaptive_mlp_packed(x2, packed3, plan3, compute_dtype=jnp.bfloat16))
    err3 = float(jnp.max(jnp.abs(out3 - ref2)))
    assert err3 < 5e-2, f"bf16 (chunked) mismatch vs reference (max abs err {err3})"

    print("KERNEL_OK")
</pallas_src>

<mosaic_0001>
module attributes {stable_mosaic.version = 11 : i64} {
  func.func @_mlp_kernel_resident(%arg0: i32, %arg1: memref<8x128xf32, #tpu.memory_space<vmem>>, %arg2: memref<128x256xf32, #tpu.memory_space<vmem>>, %arg3: memref<1x256xf32, #tpu.memory_space<vmem>>, %arg4: memref<128x128xf32, #tpu.memory_space<vmem>>, %arg5: memref<1x128xf32, #tpu.memory_space<vmem>>, %arg6: memref<8x128xf32, #tpu.memory_space<vmem>>) attributes {dimension_semantics = [#tpu.dimension_semantics<parallel>], iteration_bounds = array<i64: 2>, scalar_prefetch = 0 : i64, scratch_operands = 0 : i64, tpu.core_type = #tpu.core_type<tc>, window_params = [{transform_indices = @transform_0, window_bounds = array<i64: 8, 128>}, {pipeline_mode = #tpu.pipeline_mode<synchronous>, transform_indices = @transform_1, window_bounds = array<i64: 128, 256>}, {pipeline_mode = #tpu.pipeline_mode<synchronous>, transform_indices = @transform_2, window_bounds = array<i64: 1, 256>}, {pipeline_mode = #tpu.pipeline_mode<synchronous>, transform_indices = @transform_3, window_bounds = array<i64: 128, 128>}, {pipeline_mode = #tpu.pipeline_mode<synchronous>, transform_indices = @transform_4, window_bounds = array<i64: 1, 128>}, {transform_indices = @transform_5, window_bounds = array<i64: 8, 128>}]} {
    %c0 = arith.constant 0 : index
    %c0_0 = arith.constant 0 : index
    %0 = vector.load %arg1[%c0, %c0_0] : memref<8x128xf32, #tpu.memory_space<vmem>>, vector<8x128xf32>
    %c0_1 = arith.constant 0 : index
    %c0_2 = arith.constant 0 : index
    %1 = vector.load %arg2[%c0_1, %c0_2] : memref<128x256xf32, #tpu.memory_space<vmem>>, vector<128x256xf32>
    %c0_3 = arith.constant 0 : index
    %c0_4 = arith.constant 0 : index
    %2 = vector.load %arg3[%c0_3, %c0_4] : memref<1x256xf32, #tpu.memory_space<vmem>>, vector<1x256xf32>
    %cst = arith.constant dense<0.000000e+00> : vector<8x256xf32>
    %3 = tpu.matmul %0, %1, %cst {dimension_numbers = #tpu.dot_dimension_numbers<[1], [0], [0], [1], [0, 0, 1, 1], [], []>} : vector<8x128xf32>, vector<128x256xf32>, vector<8x256xf32> -> vector<8x256xf32>
    %4 = vector.broadcast %2 : vector<1x256xf32> to vector<8x256xf32>
    %5 = arith.addf %3, %4 : vector<8x256xf32>
    %6 = vector.extract_strided_slice %5 {offsets = [0, 0], sizes = [8, 128], strides = [1, 1]} : vector<8x256xf32> to vector<8x128xf32>
    %7 = vector.extract_strided_slice %5 {offsets = [0, 128], sizes = [8, 128], strides = [1, 1]} : vector<8x256xf32> to vector<8x128xf32>
    %cst_5 = arith.constant 5.000000e-01 : f32
    %8 = vector.broadcast %cst_5 : f32 to vector<8x128xf32>
    %9 = arith.mulf %8, %6 : vector<8x128xf32>
    %cst_6 = arith.constant 0.707106769 : f32
    %10 = vector.broadcast %cst_6 : f32 to vector<8x128xf32>
    %11 = arith.mulf %6, %10 : vector<8x128xf32>
    %12 = math.erf %11 : vector<8x128xf32>
    %cst_7 = arith.constant 1.000000e+00 : f32
    %13 = vector.broadcast %cst_7 : f32 to vector<8x128xf32>
    %14 = arith.addf %13, %12 : vector<8x128xf32>
    %15 = arith.mulf %9, %14 : vector<8x128xf32>
    %16 = arith.negf %7 : vector<8x128xf32>
    %17 = math.exp %16 : vector<8x128xf32>
    %cst_8 = arith.constant 1.000000e+00 : f32
    %18 = vector.broadcast %cst_8 : f32 to vector<8x128xf32>
    %19 = arith.addf %18, %17 : vector<8x128xf32>
    %20 = arith.divf %18, %19 : vector<8x128xf32>
    %21 = arith.mulf %15, %20 : vector<8x128xf32>
    %c0_9 = arith.constant 0 : index
    %c0_10 = arith.constant 0 : index
    %22 = vector.load %arg4[%c0_9, %c0_10] : memref<128x128xf32, #tpu.memory_space<vmem>>, vector<128x128xf32>
    %cst_11 = arith.constant dense<0.000000e+00> : vector<8x128xf32>
    %23 = tpu.matmul %21, %22, %cst_11 {dimension_numbers = #tpu.dot_dimension_numbers<[1], [0], [0], [1], [0, 0, 1, 1], [], []>} : vector<8x128xf32>, vector<128x128xf32>, vector<8x128xf32> -> vector<8x128xf32>
    %c0_12 = arith.constant 0 : index
    %c0_13 = arith.constant 0 : index
    %24 = vector.load %arg5[%c0_12, %c0_13] : memref<1x128xf32, #tpu.memory_space<vmem>>, vector<1x128xf32>
    %25 = vector.broadcast %24 : vector<1x128xf32> to vector<8x128xf32>
    %26 = arith.addf %23, %25 : vector<8x128xf32>
    %c0_14 = arith.constant 0 : index
    %c0_15 = arith.constant 0 : index
    %27 = vector.load %arg6[%c0_14, %c0_15] : memref<8x128xf32, #tpu.memory_space<vmem>>, vector<8x128xf32>
    tpu.vector_store %arg6[%c0_14, %c0_15], %26 {strides = array<i32>} : memref<8x128xf32, #tpu.memory_space<vmem>>, vector<8x128xf32>,
    return
  }
  func.func @transform_0(%arg0: i32) -> (i32, i32) {
    %c0_i32 = arith.constant 0 : i32
    %c0_i32_0 = arith.constant 0 : i32
    return %arg0, %c0_i32 : i32, i32
  }
  func.func @transform_1(%arg0: i32) -> (i32, i32) {
    %c0_i32 = arith.constant 0 : i32
    %c0_i32_0 = arith.constant 0 : i32
    %c0_i32_1 = arith.constant 0 : i32
    return %c0_i32, %c0_i32_0 : i32, i32
  }
  func.func @transform_2(%arg0: i32) -> (i32, i32) {
    %c0_i32 = arith.constant 0 : i32
    %c0_i32_0 = arith.constant 0 : i32
    %c0_i32_1 = arith.constant 0 : i32
    return %c0_i32, %c0_i32_0 : i32, i32
  }
  func.func @transform_3(%arg0: i32) -> (i32, i32) {
    %c0_i32 = arith.constant 0 : i32
    %c0_i32_0 = arith.constant 0 : i32
    %c0_i32_1 = arith.constant 0 : i32
    return %c0_i32, %c0_i32_0 : i32, i32
  }
  func.func @transform_4(%arg0: i32) -> (i32, i32) {
    %c0_i32 = arith.constant 0 : i32
    %c0_i32_0 = arith.constant 0 : i32
    %c0_i32_1 = arith.constant 0 : i32
    return %c0_i32, %c0_i32_0 : i32, i32
  }
  func.func @transform_5(%arg0: i32) -> (i32, i32) {
    %c0_i32 = arith.constant 0 : i32
    %c0_i32_0 = arith.constant 0 : i32
    return %arg0, %c0_i32 : i32, i32
  }
}

</mosaic_0001>

<llo_original>
// kernel: tpu_custom_call.1
$region0: #{tpu_custom_call.1}
  #allocation0 [shape = 'u32[]', space=smem, size = 0x4, offset = 0x4, fixed_abs, tag = 'smem constant byte address 0x4 - core index']
  #allocation1 [shape = 'u32[72,128]{1,0:T(1,128)}', space=vmem, size = 0x9000, scoped, tag = 'internal scratch']
  %s0 = inlined_call_operand.hbm [shape: f32[16,128], index: 0, kind: input, shape index: {}]
  %s1 = inlined_call_operand.hbm [shape: f32[128,256], index: 1, kind: input, shape index: {}]
  %s2 = inlined_call_operand.hbm [shape: f32[1,256], index: 2, kind: input, shape index: {}]
  %s3 = inlined_call_operand.hbm [shape: f32[128,128], index: 3, kind: input, shape index: {}]
  %s4 = inlined_call_operand.vmem [shape: f32[1,128], index: 4, kind: input, shape index: {}]
  %s5 = inlined_call_operand.hbm [shape: f32[16,128], index: 5, kind: output, shape index: {}]
  %s6 = sld [smem:[#allocation0]]
  $region69: #{tpu_custom_call.1} parent=0
    _
  %s8 = ssub.s32 1, %s6
  %s9 = scalar_select 0, %s8, %s6
  $region1: #{tpu_custom_call.1} parent=0
    #allocation2 [shape = 'u8[8192]{0}', space=vmem, size = 0x2000, scoped, tag = 'input window, operand 0']
    #allocation3 [shape = 's32[2]{0}', space=sflag, size = 0x8, scoped, tag = 'scoped memory for tpu_custom_call.1']
    #allocation4 [shape = 's32[2]{0}', space=sflag, size = 0x8, scoped, tag = 'scoped memory for tpu_custom_call.1']
    #allocation5 [shape = 'u8[131072]{0}', space=vmem, size = 0x20000, scoped, tag = 'input window, operand 1, single buffered']
    #allocation6 [shape = 's32[1]{0}', space=sflag, size = 0x4, scoped, tag = 'scoped memory for tpu_custom_call.1']
    #allocation7 [shape = 'u8[1024]{0}', space=vmem, size = 0x400, scoped, tag = 'input window, operand 2, single buffered']
    #allocation8 [shape = 'u8[65536]{0}', space=vmem, size = 0x10000, scoped, tag = 'input window, operand 3, single buffered']
    #allocation9 [shape = 's32[1]{0}', space=sflag, size = 0x4, scoped, tag = 'scoped memory for tpu_custom_call.1']
    #allocation10 [shape = 'u8[8192]{0}', space=vmem, size = 0x2000, scoped, tag = 'output window, operand 0']
    %10 = vsyncpa [#allocation3], 0
    %s11 = scalar_lea.sflag [#allocation3], 1
    %12 = vsyncpa %s11, 0
    %13 = vsyncpa [#allocation6], 0
    %14 = vsyncpa [#allocation9], 0
    %15 = vsyncpa [#allocation4], 0
    %s16 = scalar_lea.sflag [#allocation4], 1
    %17 = vsyncpa %s16, 0
    loop: start=0, step=1, limit=4
    $region2: #{tpu_custom_call.1} parent=1 // loop_pre_header
      _
    $region3: #{tpu_custom_call.1} parent=1 // loop_header
      %s19 = sphi 0, %s23
      %p20 = scmp.ge.s32.totalorder %s19, 4
      %s29 = sphi 0, %s31
      %s32 = sphi 0, %s29
      %s33 = sphi 0, %s32
      %s49 = sphi 0, %s33
      %s53 = sphi 0, %s53
      %s55 = sphi 0, %s53
      %s56 = sphi 0, %s55
      %s70 = sphi 0, %s56
      %s74 = sphi 0, %s74
      %s76 = sphi 0, %s74
      %s77 = sphi 0, %s76
      %s91 = sphi 0, %s77
      %s95 = sphi 0, %s95
      %s97 = sphi 0, %s95
      %s98 = sphi 0, %s97
      %s112 = sphi 0, %s98
      %s116 = sphi 0, %s116
      %s118 = sphi 0, %s116
      %s119 = sphi 0, %s118
      %s133 = sphi 0, %s119
      %s139 = sphi 0, %s141
      %s142 = sphi 0, %s139
      %s143 = sphi 0, %s142
      %s159 = sphi 0, %s143
    $region4: #{tpu_custom_call.1} parent=1 // loop_header_branch
      %22 = sbr.rel (%p20) target = $region8
    $region5: #{tpu_custom_call.1} parent=1 // loop_body
      %s24 = ssub.s32 %s19, 1
      %s25 = ssub.s32 %s19, 2
      %s26 = sadd.s32 %s19, 1
      %s27 = ssub.s32 %s19, %s26
      %p28 = scmp.eq.s32.totalorder %s27, 0
      %s30 = sadd.s32 %s29, 1
      %s31 = scalar_select %p28, %s29, %s30
      %p34 = pneg %p28
      %p35 = scmp.eq.s32.totalorder %s19, 1
      %p36 = por %p34, %p35
      %p37 = scmp.ne.s32.totalorder %s29, %s32
      %p38 = scmp.eq.s32.totalorder %s19, 0
      %p39 = por %p37, %p38
      %p40 = scmp.ne.s32.totalorder %s29, %s32
      %p41 = scmp.eq.s32.totalorder %s24, 1
      %p42 = por %p40, %p41
      %p43 = scmp.ne.s32.totalorder %s32, %s33
      %p44 = scmp.eq.s32.totalorder %s24, 0
      %p45 = por %p43, %p44
      %p46 = scmp.ne.s32.totalorder %s32, %s33
      %p47 = scmp.eq.s32.totalorder %s25, 1
      %p48 = por %p46, %p47
      %p50 = scmp.ne.s32.totalorder %s33, %s49
      %p51 = scmp.eq.s32.totalorder %s25, 0
      %p52 = por %p50, %p51
      %s54 = sadd.s32 %s53, 1
      %p57 = scmp.eq.s32.totalorder %s19, 1
      %p58 = scmp.ne.s32.totalorder %s53, %s55
      %p59 = scmp.eq.s32.totalorder %s19, 0
      %p60 = por %p58, %p59
      %p61 = scmp.ne.s32.totalorder %s53, %s55
      %p62 = scmp.eq.s32.totalorder %s24, 1
      %p63 = por %p61, %p62
      %p64 = scmp.ne.s32.totalorder %s55, %s56
      %p65 = scmp.eq.s32.totalorder %s24, 0
      %p66 = por %p64, %p65
      %p67 = scmp.ne.s32.totalorder %s55, %s56
      %p68 = scmp.eq.s32.totalorder %s25, 1
      %p69 = por %p67, %p68
      %p71 = scmp.ne.s32.totalorder %s56, %s70
      %p72 = scmp.eq.s32.totalorder %s25, 0
      %p73 = por %p71, %p72
      %s75 = sadd.s32 %s74, 1
      %p78 = scmp.eq.s32.totalorder %s19, 1
      %p79 = scmp.ne.s32.totalorder %s74, %s76
      %p80 = scmp.eq.s32.totalorder %s19, 0
      %p81 = por %p79, %p80
      %p82 = scmp.ne.s32.totalorder %s74, %s76
      %p83 = scmp.eq.s32.totalorder %s24, 1
      %p84 = por %p82, %p83
      %p85 = scmp.ne.s32.totalorder %s76, %s77
      %p86 = scmp.eq.s32.totalorder %s24, 0
      %p87 = por %p85, %p86
      %p88 = scmp.ne.s32.totalorder %s76, %s77
      %p89 = scmp.eq.s32.totalorder %s25, 1
      %p90 = por %p88, %p89
      %p92 = scmp.ne.s32.totalorder %s77, %s91
      %p93 = scmp.eq.s32.totalorder %s25, 0
      %p94 = por %p92, %p93
      %s96 = sadd.s32 %s95, 1
      %p99 = scmp.eq.s32.totalorder %s19, 1
      %p100 = scmp.ne.s32.totalorder %s95, %s97
      %p101 = scmp.eq.s32.totalorder %s19, 0
      %p102 = por %p100, %p101
      %p103 = scmp.ne.s32.totalorder %s95, %s97
      %p104 = scmp.eq.s32.totalorder %s24, 1
      %p105 = por %p103, %p104
      %p106 = scmp.ne.s32.totalorder %s97, %s98
      %p107 = scmp.eq.s32.totalorder %s24, 0
      %p108 = por %p106, %p107
      %p109 = scmp.ne.s32.totalorder %s97, %s98
      %p110 = scmp.eq.s32.totalorder %s25, 1
      %p111 = por %p109, %p110
      %p113 = scmp.ne.s32.totalorder %s98, %s112
      %p114 = scmp.eq.s32.totalorder %s25, 0
      %p115 = por %p113, %p114
      %s117 = sadd.s32 %s116, 1
      %p120 = scmp.eq.s32.totalorder %s19, 1
      %p121 = scmp.ne.s32.totalorder %s116, %s118
      %p122 = scmp.eq.s32.totalorder %s19, 0
      %p123 = por %p121, %p122
      %p124 = scmp.ne.s32.totalorder %s116, %s118
      %p125 = scmp.eq.s32.totalorder %s24, 1
      %p126 = por %p124, %p125
      %p127 = scmp.ne.s32.totalorder %s118, %s119
      %p128 = scmp.eq.s32.totalorder %s24, 0
      %p129 = por %p127, %p128
      %p130 = scmp.ne.s32.totalorder %s118, %s119
      %p131 = scmp.eq.s32.totalorder %s25, 1
      %p132 = por %p130, %p131
      %p134 = scmp.ne.s32.totalorder %s119, %s133
      %p135 = scmp.eq.s32.totalorder %s25, 0
      %p136 = por %p134, %p135
      %s137 = ssub.s32 %s19, %s26
      %p138 = scmp.eq.s32.totalorder %s137, 0
      %s140 = sadd.s32 %s139, 1
      %s141 = scalar_select %p138, %s139, %s140
      %p144 = pneg %p138
      %p145 = scmp.eq.s32.totalorder %s19, 1
      %p146 = por %p144, %p145
      %p147 = scmp.ne.s32.totalorder %s139, %s142
      %p148 = scmp.eq.s32.totalorder %s19, 0
      %p149 = por %p147, %p148
      %p150 = scmp.ne.s32.totalorder %s139, %s142
      %p151 = scmp.eq.s32.totalorder %s24, 1
      %p152 = por %p150, %p151
      %p153 = scmp.ne.s32.totalorder %s142, %s143
      %p154 = scmp.eq.s32.totalorder %s24, 0
      %p155 = por %p153, %p154
      %p156 = scmp.ne.s32.totalorder %s142, %s143
      %p157 = scmp.eq.s32.totalorder %s25, 1
      %p158 = por %p156, %p157
      %p160 = scmp.ne.s32.totalorder %s143, %s159
      %p161 = scmp.eq.s32.totalorder %s25, 0
      %p162 = por %p160, %p161
      %p163 = scmp.le.s32.totalorder 1, %s19
      %p164 = scmp.lt.s32.totalorder %s19, 3
      %p165 = pnand %p163, %p164
      %p166 = pneg %p165
      // Predicated region
      $region9: #{tpu_custom_call.1} parent=5 // pred_check
        _
      $region10: #{tpu_custom_call.1} parent=5 // pred_check_branch
        %168 = sbr.rel (%p165) target = $region12
      $region11: #{tpu_custom_call.1} parent=5 // pred_region
        %s169 = ssub.s32 %s19, 1
        // Predicated region
        $region13: #{tpu_custom_call.1} parent=11 // pred_check
          %p170 = pneg %p66
        $region14: #{tpu_custom_call.1} parent=11 // pred_check_branch
          %172 = sbr.rel (%p170) target = $region16
        $region15: #{tpu_custom_call.1} parent=11 // pred_region
          %174 = vsyncadd [#allocation6], 0
          %s175 = sshll.u32 %s1, 4
          %s176 = int_to_ptr.hbm [resolvable:$true] %s175
          %s177 = sshll.u32 [#allocation5], 4
          %s178 = int_to_ptr.vmem [resolvable:$true] %s177
          %183 = dma.hbm_to_vmem [thread:$0]  %s176, 4096, %s178, [#allocation6], 256, 256, 16
        $region16: #{tpu_custom_call.1} parent=11 // pred_fallthru
          _
        // Predicated region
        $region17: #{tpu_custom_call.1} parent=11 // pred_check
          %p184 = pneg %p87
        $region18: #{tpu_custom_call.1} parent=11 // pred_check_branch
          %186 = sbr.rel (%p184) target = $region20
        $region19: #{tpu_custom_call.1} parent=11 // pred_region
          %188 = vsyncadd [#allocation6], 0
          %s190 = sshll.u32 %s2, 4
          %s191 = int_to_ptr.hbm [resolvable:$true] %s190
          %s192 = sshll.u32 [#allocation7], 4
          %s193 = int_to_ptr.vmem [resolvable:$true] %s192
          %195 = dma.hbm_to_vmem [thread:$0]  %s191, 32, %s193, [#allocation6]
        $region20: #{tpu_custom_call.1} parent=11 // pred_fallthru
          _
        // Predicated region
        $region21: #{tpu_custom_call.1} parent=11 // pred_check
          %p196 = pneg %p108
        $region22: #{tpu_custom_call.1} parent=11 // pred_check_branch
          %198 = sbr.rel (%p196) target = $region24
        $region23: #{tpu_custom_call.1} parent=11 // pred_region
          %200 = vsyncadd [#allocation9], 0
          %s201 = sshll.u32 %s3, 4
          %s202 = int_to_ptr.hbm [resolvable:$true] %s201
          %s203 = sshll.u32 [#allocation8], 4
          %s204 = int_to_ptr.vmem [resolvable:$true] %s203
          %209 = dma.hbm_to_vmem [thread:$0]  %s202, 2048, %s204, [#allocation9], 128, 128, 8
        $region24: #{tpu_custom_call.1} parent=11 // pred_fallthru
          _
        // Predicated region
        $region25: #{tpu_custom_call.1} parent=11 // pred_check
          %p210 = pneg %p129
        $region26: #{tpu_custom_call.1} parent=11 // pred_check_branch
          %212 = sbr.rel (%p210) target = $region28
        $region27: #{tpu_custom_call.1} parent=11 // pred_region
          _
        $region28: #{tpu_custom_call.1} parent=11 // pred_fallthru
          _
      $region12: #{tpu_custom_call.1} parent=5 // pred_fallthru
        _
      %p213 = scmp.lt.s32.totalorder %s19, 2
      // Predicated region
      $region29: #{tpu_custom_call.1} parent=5 // pred_check
        %p214 = pneg %p213
      $region30: #{tpu_custom_call.1} parent=5 // pred_check_branch
        %216 = sbr.rel (%p214) target = $region32
      $region31: #{tpu_custom_call.1} parent=5 // pred_region
        // Predicated region
        $region33: #{tpu_custom_call.1} parent=31 // pred_check
          %p217 = pneg %p39
        $region34: #{tpu_custom_call.1} parent=31 // pred_check_branch
          %219 = sbr.rel (%p217) target = $region36
        $region35: #{tpu_custom_call.1} parent=31 // pred_region
          %s220 = sand.u32 %s29, 1
          %s221 = scalar_lea.sflag [#allocation3], %s220
          %s222 = sand.u32 %s29, 1
          %s223 = smul.addr %s222, 8
          %s224 = scalar_lea.vmem [#allocation2], %s223
          %226 = vsyncadd %s221, 0
          %s227 = smul.addr %s19, 8
          %s228 = scalar_lea.hbm %s0, %s227
          %s230 = sshll.u32 %s228, 4
          %s231 = int_to_ptr.hbm [resolvable:$true] %s230
          %s232 = sshll.u32 %s224, 4
          %s233 = int_to_ptr.vmem [resolvable:$true] %s232
          %235 = dma.hbm_to_vmem [thread:$0]  %s231, 128, %s233, %s221
        $region36: #{tpu_custom_call.1} parent=31 // pred_fallthru
          _
      $region32: #{tpu_custom_call.1} parent=5 // pred_fallthru
        _
      %p236 = scmp.le.s32.totalorder 1, %s19
      %p237 = scmp.lt.s32.totalorder %s19, 3
      %p238 = pnand %p236, %p237
      %p239 = pneg %p238
      // Predicated region
      $region37: #{tpu_custom_call.1} parent=5 // pred_check
        _
      $region38: #{tpu_custom_call.1} parent=5 // pred_check_branch
        %241 = sbr.rel (%p238) target = $region40
      $region39: #{tpu_custom_call.1} parent=5 // pred_region
        %s242 = ssub.s32 %s19, 1
        %s243 = sand.u32 %s32, 1
        %s244 = scalar_lea.sflag [#allocation3], %s243
        %s245 = sand.u32 %s32, 1
        %s246 = smul.addr %s245, 8
        %s247 = scalar_lea.vmem [#allocation2], %s246
        // Predicated region
        $region41: #{tpu_custom_call.1} parent=39 // pred_check
          %p248 = pneg %p45
        $region42: #{tpu_custom_call.1} parent=39 // pred_check_branch
          %250 = sbr.rel (%p248) target = $region44
        $region43: #{tpu_custom_call.1} parent=39 // pred_region
          %252 = dma.done %s244, 128
        $region44: #{tpu_custom_call.1} parent=39 // pred_fallthru
          _
        // Predicated region
        $region45: #{tpu_custom_call.1} parent=39 // pred_check
          %p253 = pneg %p66
        $region46: #{tpu_custom_call.1} parent=39 // pred_check_branch
          %255 = sbr.rel (%p253) target = $region48
        $region47: #{tpu_custom_call.1} parent=39 // pred_region
          %257 = dma.done [#allocation6], 4096
        $region48: #{tpu_custom_call.1} parent=39 // pred_fallthru
          _
        // Predicated region
        $region49: #{tpu_custom_call.1} parent=39 // pred_check
          %p258 = pneg %p87
        $region50: #{tpu_custom_call.1} parent=39 // pred_check_branch
          %260 = sbr.rel (%p258) target = $region52
        $region51: #{tpu_custom_call.1} parent=39 // pred_region
          %262 = dma.done [#allocation6], 32
        $region52: #{tpu_custom_call.1} parent=39 // pred_fallthru
          _
        // Predicated region
        $region53: #{tpu_custom_call.1} parent=39 // pred_check
          %p263 = pneg %p108
        $region54: #{tpu_custom_call.1} parent=39 // pred_check_branch
          %265 = sbr.rel (%p263) target = $region56
        $region55: #{tpu_custom_call.1} parent=39 // pred_region
          %267 = dma.done [#allocation9], 2048
        $region56: #{tpu_custom_call.1} parent=39 // pred_fallthru
          _
        %s268 = sand.u32 %s32, 1
        %s269 = scalar_lea.sflag [#allocation3], %s268
        %s270 = sand.u32 %s32, 1
        %s271 = smul.addr %s270, 8
        %s272 = scalar_lea.vmem [#allocation2], %s271
        %p273 = pneg %p45
        %p274 = pneg %p42
        %p275 = pneg %p66
        %p276 = pneg %p63
        %p277 = pneg %p87
        %p278 = pneg %p84
        %p279 = pneg %p108
        %p280 = pneg %p105
        %p281 = pneg %p129
        %p282 = pneg %p126
        %p283 = pneg %p155
        %p284 = pneg %p152
        %s285 = sand.u32 %s142, 1
        %s286 = scalar_lea.sflag [#allocation4], %s285
        %s287 = sand.u32 %s142, 1
        %s288 = smul.addr %s287, 8
        %s289 = scalar_lea.vmem [#allocation10], %s288
        %v290 = vld [vmem:[%s247] sm:$0xff]
        %v291 = vld [vmem:[#allocation5] sm:$0xff]
        %v292 = vld [vmem:[#allocation5 + $0x8] sm:$0xff]
        %v293 = vld [vmem:[#allocation5 + $0x10] sm:$0xff]
        %v294 = vld [vmem:[#allocation5 + $0x18] sm:$0xff]
        %v295 = vld [vmem:[#allocation5 + $0x20] sm:$0xff]
        %v296 = vld [vmem:[#allocation5 + $0x28] sm:$0xff]
        %v297 = vld [vmem:[#allocation5 + $0x30] sm:$0xff]
        %v298 = vld [vmem:[#allocation5 + $0x38] sm:$0xff]
        %v299 = vld [vmem:[#allocation5 + $0x40] sm:$0xff]
        %v300 = vld [vmem:[#allocation5 + $0x48] sm:$0xff]
        %v301 = vld [vmem:[#allocation5 + $0x50] sm:$0xff]
        %v302 = vld [vmem:[#allocation5 + $0x58] sm:$0xff]
        %v303 = vld [vmem:[#allocation5 + $0x60] sm:$0xff]
        %v304 = vld [vmem:[#allocation5 + $0x68] sm:$0xff]
        %v305 = vld [vmem:[#allocation5 + $0x70] sm:$0xff]
        %v306 = vld [vmem:[#allocation5 + $0x78] sm:$0xff]
        %v307 = vld [vmem:[#allocation5 + $0x80] sm:$0xff]
        %v308 = vld [vmem:[#allocation5 + $0x88] sm:$0xff]
        %v309 = vld [vmem:[#allocation5 + $0x90] sm:$0xff]
        %v310 = vld [vmem:[#allocation5 + $0x98] sm:$0xff]
        %v311 = vld [vmem:[#allocation5 + $0xa0] sm:$0xff]
        %v312 = vld [vmem:[#allocation5 + $0xa8] sm:$0xff]
        %v313 = vld [vmem:[#allocation5 + $0xb0] sm:$0xff]
        %v314 = vld [vmem:[#allocation5 + $0xb8] sm:$0xff]
        %v315 = vld [vmem:[#allocation5 + $0xc0] sm:$0xff]
        %v316 = vld [vmem:[#allocation5 + $0xc8] sm:$0xff]
        %v317 = vld [vmem:[#allocation5 + $0xd0] sm:$0xff]
        %v318 = vld [vmem:[#allocation5 + $0xd8] sm:$0xff]
        %v319 = vld [vmem:[#allocation5 + $0xe0] sm:$0xff]
        %v320 = vld [vmem:[#allocation5 + $0xe8] sm:$0xff]
        %v321 = vld [vmem:[#allocation5 + $0xf0] sm:$0xff]
        %v322 = vld [vmem:[#allocation5 + $0xf8] sm:$0xff]
        %v323 = vld [vmem:[#allocation7] sm:$0x3]
        %v325 = vperm.slane %v323, 0
        %v326 = vperm.slane %v323, 1
        %329 = vmatpush.msra.mxu0 %v321
        %330 = vmatpush.msra.mxu0 %v319
        %331 = vmatpush.msra.mxu0 %v317
        %332 = vmatpush.msra.mxu0 %v315
        %333 = vmatpush.msra.mxu0 %v313
        %334 = vmatpush.msra.mxu0 %v311
        %335 = vmatpush.msra.mxu0 %v309
        %336 = vmatpush.msra.mxu0 %v307
        %337 = vmatpush.msra.mxu0 %v305
        %338 = vmatpush.msra.mxu0 %v303
        %339 = vmatpush.msra.mxu0 %v301
        %340 = vmatpush.msra.mxu0 %v299
        %341 = vmatpush.msra.mxu0 %v297
        %342 = vmatpush.msra.mxu0 %v295
        %343 = vmatpush.msra.mxu0 %v293
        %344 = vmatpush.msra.mxu0 %v291
        %345 = vmatmul.f32.gmra.mxu0 %v290
        %v346 = vpop.f32.mrf.mxu0
        %v347 = vadd.f32 %v325, %v346
        %348 = vdwg.mxu0
        %349 = vmatpush.msra.mxu0 %v322
        %350 = vmatpush.msra.mxu0 %v320
        %351 = vmatpush.msra.mxu0 %v318
        %352 = vmatpush.msra.mxu0 %v316
        %353 = vmatpush.msra.mxu0 %v314
        %354 = vmatpush.msra.mxu0 %v312
        %355 = vmatpush.msra.mxu0 %v310
        %356 = vmatpush.msra.mxu0 %v308
        %357 = vmatpush.msra.mxu0 %v306
        %358 = vmatpush.msra.mxu0 %v304
        %359 = vmatpush.msra.mxu0 %v302
        %360 = vmatpush.msra.mxu0 %v300
        %361 = vmatpush.msra.mxu0 %v298
        %362 = vmatpush.msra.mxu0 %v296
        %363 = vmatpush.msra.mxu0 %v294
        %364 = vmatpush.msra.mxu0 %v292
        %365 = vmatmul.f32.gmra.mxu0 %v290
        %v366 = vpop.f32.mrf.mxu0
        %v367 = vadd.f32 %v326, %v366
        %368 = vdwg.mxu0
        %v369 = vmul.f32 %v347, 0.5
        %v370 = vmul.f32 %v347, 0.70710677
        %v371 = vmul.f32 %v370, %v370
        %v372 = vmin.f32 16.0, %v371
        %v373 = vmul.f32 %v372, 2.1237322e-06
        %v374 = vadd.f32 %v373, 0.00028619796
        %v375 = vmul.f32 %v372, %v374
        %v376 = vadd.f32 %v375, 0.0036580483
        %v377 = vmul.f32 %v372, %v376
        %v378 = vadd.f32 %v377, 0.05243302
        %v379 = vmul.f32 %v372, %v378
        %v380 = vadd.f32 %v379, 0.18741608
        %v381 = vmul.f32 %v372, %v380
        %v382 = vadd.f32 %v381, 1.1283791
        %v383 = vmul.f32 %v370, %v382
        %v384 = vmul.f32 %v372, 3.8918573e-05
        %v385 = vadd.f32 %v384, 0.001143296
        %v386 = vmul.f32 %v372, %v385
        %v387 = vadd.f32 %v386, 0.014752088
        %v388 = vmul.f32 %v372, %v387
        %v389 = vadd.f32 %v388, 0.112945676
        %v390 = vmul.f32 %v372, %v389
        %v391 = vadd.f32 %v390, 0.4994258
        %v392 = vmul.f32 %v372, %v391
        %v393 = vadd.f32 %v392, 1.0
        %v394 = vrcp.pop %v393
        %v395 = vmul.f32 %v393, %v394
        %v396 = vsub.f32 1.0, %v395
        %v397 = vmul.f32 %v394, %v396
        %v398 = vadd.f32 %v394, %v397
        %vm399 = vweird.f32 %v393
        %vm400 = vweird.f32 %v394
        %vm401 = vmor %vm399, %vm400
        %v402 = vsel %vm401, %v394, %v398
        %v403 = vand.u32 2147483647, %v393
        %vm404 = vcmp.eq.f32.partialorder %v403, 8.507059e+37
        %v405 = vand.u32 %v393, 2147483648
        %v406 = vor.u32 1.1754944e-38, %v405
        %v407 = vsel %vm404, %v406, %v402
        %v408 = vmul.f32 %v383, %v407
        %v409 = vmin.f32 %v408, 1.0
        %v410 = vmax.f32 %v409, -1.0
        %v411 = vadd.f32 %v410, 1.0
        %v412 = vmul.f32 %v369, %v411
        %v413 = vxor.u32 %v367, 2147483648
        %v414 = vmul.f32 %v413, 1.442695
        %v415 = vpow.pop %v414
        %v416 = vadd.f32 %v415, 1.0
        %v417 = vrcp.pop %v416
        %v418 = vmul.f32 %v416, %v417
        %v419 = vsub.f32 1.0, %v418
        %v420 = vmul.f32 %v417, %v419
        %v421 = vadd.f32 %v417, %v420
        %vm422 = vweird.f32 %v416
        %vm423 = vweird.f32 %v417
        %vm424 = vmor %vm422, %vm423
        %v425 = vsel %vm424, %v417, %v421
        %v426 = vand.u32 2147483647, %v416
        %vm427 = vcmp.eq.f32.partialorder %v426, 8.507059e+37
        %v428 = vand.u32 %v416, 2147483648
        %v429 = vor.u32 1.1754944e-38, %v428
        %v430 = vsel %vm427, %v429, %v425
        %v431 = vmul.f32 1.0, %v430
        %v432 = vmul.f32 %v412, %v431
        %v433 = vld [vmem:[#allocation8] sm:$0xff]
        %v434 = vld [vmem:[#allocation8 + $0x8] sm:$0xff]
        %v435 = vld [vmem:[#allocation8 + $0x10] sm:$0xff]
        %v436 = vld [vmem:[#allocation8 + $0x18] sm:$0xff]
        %v437 = vld [vmem:[#allocation8 + $0x20] sm:$0xff]
        %v438 = vld [vmem:[#allocation8 + $0x28] sm:$0xff]
        %v439 = vld [vmem:[#allocation8 + $0x30] sm:$0xff]
        %v440 = vld [vmem:[#allocation8 + $0x38] sm:$0xff]
        %v441 = vld [vmem:[#allocation8 + $0x40] sm:$0xff]
        %v442 = vld [vmem:[#allocation8 + $0x48] sm:$0xff]
        %v443 = vld [vmem:[#allocation8 + $0x50] sm:$0xff]
        %v444 = vld [vmem:[#allocation8 + $0x58] sm:$0xff]
        %v445 = vld [vmem:[#allocation8 + $0x60] sm:$0xff]
        %v446 = vld [vmem:[#allocation8 + $0x68] sm:$0xff]
        %v447 = vld [vmem:[#allocation8 + $0x70] sm:$0xff]
        %v448 = vld [vmem:[#allocation8 + $0x78] sm:$0xff]
        %v449 = vld [vmem:[%s4] sm:$0x1]
        %v451 = vperm.slane %v449, 0
        %453 = vmatpush.msra.mxu0 %v448
        %454 = vmatpush.msra.mxu0 %v447
        %455 = vmatpush.msra.mxu0 %v446
        %456 = vmatpush.msra.mxu0 %v445
        %457 = vmatpush.msra.mxu0 %v444
        %458 = vmatpush.msra.mxu0 %v443
        %459 = vmatpush.msra.mxu0 %v442
        %460 = vmatpush.msra.mxu0 %v441
        %461 = vmatpush.msra.mxu0 %v440
        %462 = vmatpush.msra.mxu0 %v439
        %463 = vmatpush.msra.mxu0 %v438
        %464 = vmatpush.msra.mxu0 %v437
        %465 = vmatpush.msra.mxu0 %v436
        %466 = vmatpush.msra.mxu0 %v435
        %467 = vmatpush.msra.mxu0 %v434
        %468 = vmatpush.msra.mxu0 %v433
        %469 = vmatmul.f32.gmra.mxu0 %v432
        %v470 = vpop.f32.mrf.mxu0
        %v471 = vadd.f32 %v451, %v470
        %472 = vdwg.mxu0
        %473 = vst [vmem:[%s289] sm:$0xff] %v471
        %s474 = sand.u32 %s142, 1
        %s475 = scalar_lea.sflag [#allocation4], %s474
        %s476 = sand.u32 %s142, 1
        %s477 = smul.addr %s476, 8
        %s478 = scalar_lea.vmem [#allocation10], %s477
        // Predicated region
        $region57: #{tpu_custom_call.1} parent=39 // pred_check
          %p479 = pneg %p152
        $region58: #{tpu_custom_call.1} parent=39 // pred_check_branch
          %481 = sbr.rel (%p479) target = $region60
        $region59: #{tpu_custom_call.1} parent=39 // pred_region
          %483 = vsyncadd %s475, 0
          %s484 = smul.addr %s24, 8
          %s485 = scalar_lea.hbm %s5, %s484
          %s487 = sshll.u32 %s478, 4
          %s488 = int_to_ptr.vmem [resolvable:$true] %s487
          %s489 = sshll.u32 %s485, 4
          %s490 = int_to_ptr.hbm [resolvable:$true] %s489
          %492 = dma.vmem_to_hbm [thread:$0]  %s488, 128, %s490, %s475
        $region60: #{tpu_custom_call.1} parent=39 // pred_fallthru
          _
      $region40: #{tpu_custom_call.1} parent=5 // pred_fallthru
        _
      %p493 = scmp.le.s32.totalorder 2, %s19
      // Predicated region
      $region61: #{tpu_custom_call.1} parent=5 // pred_check
        %p494 = pneg %p493
      $region62: #{tpu_custom_call.1} parent=5 // pred_check_branch
        %496 = sbr.rel (%p494) target = $region64
      $region63: #{tpu_custom_call.1} parent=5 // pred_region
        %s497 = ssub.s32 %s19, 2
        // Predicated region
        $region65: #{tpu_custom_call.1} parent=63 // pred_check
          %p498 = pneg %p158
        $region66: #{tpu_custom_call.1} parent=63 // pred_check_branch
          %500 = sbr.rel (%p498) target = $region68
        $region67: #{tpu_custom_call.1} parent=63 // pred_region
          %s501 = sand.u32 %s143, 1
          %s502 = scalar_lea.sflag [#allocation4], %s501
          %s503 = sand.u32 %s143, 1
          %s504 = smul.addr %s503, 8
          %s505 = scalar_lea.vmem [#allocation10], %s504
          %507 = dma.done %s502, 128
        $region68: #{tpu_custom_call.1} parent=63 // pred_fallthru
          _
      $region64: #{tpu_custom_call.1} parent=5 // pred_fallthru
        _
    $region6: #{tpu_custom_call.1} parent=1 // loop_footer
      %s23 = sadd.s32 1, %s19
    $region7: #{tpu_custom_call.1} parent=1 // loop_footer_branch
      %18 = sbr.rel target = $region3
    $region8: #{tpu_custom_call.1} parent=1 // loop_exit
      _
    %508 = vsyncpa [#allocation3], 1
    %s509 = scalar_lea.sflag [#allocation3], 1
    %510 = vsyncpa %s509, 1
    %511 = vsyncpa [#allocation6], 1
    %512 = vsyncpa [#allocation9], 1
    %513 = vsyncpa [#allocation4], 1
    %s514 = scalar_lea.sflag [#allocation4], 1
    %515 = vsyncpa %s514, 1

</llo_original>
